<compile_context>
chip_gen: v6e
topology: v6e:2x2x1
jax: 0.10.0
libtpu: 0.0.40
codegen_flags: <defaults>
</compile_context>

<pallas_src>
import functools
import math

import jax
import jax.numpy as jnp
from jax import lax
from jax.experimental import pallas as pl
from jax.experimental.pallas import tpu as pltpu


def _token_emb_kernel(tok_ref, emb_ref, o_ref, *, tn, scale):
    """Gather TN embedding rows (8 at a time) and scale by sqrt(E).

    tok_ref: SMEM (N_pad,) int32   -- scalar-prefetched token ids (all tiles)
    emb_ref: VMEM (V, E)           -- embedding table (constant index_map ->
                                      fetched once, stays resident)
    o_ref  : VMEM (TN, E)          -- output tile
    """
    tile_base = pl.multiple_of(pl.program_id(0) * tn, tn)
    n_chunks = tn // 8

    def chunk(c, carry):
        row0 = pl.multiple_of(c * 8, 8)
        # Eight dynamic (1, E) row loads from the resident table ...
        rows = [
            emb_ref[pl.ds(tok_ref[tile_base + row0 + r], 1), :]
            for r in range(8)
        ]
        # ... merged (sublane concat) into one dense (8, E) block, scaled
        # once, and written with a single aligned, unmasked store.
        block = jnp.concatenate(rows, axis=0)
        o_ref[pl.ds(row0, 8), :] = (block * scale).astype(o_ref.dtype)
        return carry

    lax.fori_loop(0, n_chunks, chunk, 0, unroll=min(4, n_chunks))


def token_embedding(tokens, emb_table, *, tn=512):
    """tokens: (B, S) integer array; emb_table: (V, E) -> (B, S, E)."""
    B, S = tokens.shape
    V, E = emb_table.shape
    N = B * S
    itemsize = jnp.dtype(emb_table.dtype).itemsize

    table_bytes = V * E * itemsize
    if 2 * table_bytes > (40 << 20):
        # TODO(synk): implement the V-tiled / manual-HBM-row-gather path for
        # tables that do not fit per-TC VMEM (esp. v7x's 64 MiB).
        raise NotImplementedError(
            "Embedding table too large to keep VMEM-resident; needs the "
            "tiled-over-V or manual HBM row-gather path.")

    # Token tile: multiple of 8 sublanes; shrunk for tiny N (no redundant
    # padded rows), large otherwise to amortize per-grid-step overhead.
    tn = max(8, (tn // 8) * 8)
    tn = min(tn, ((N + 7) // 8) * 8)
    n_pad = ((N + tn - 1) // tn) * tn
    n_tiles = n_pad // tn
    scale = float(math.sqrt(E))

    # Flatten, clamp (keeps the in-kernel row load in bounds), pad to a
    # multiple of TN so every output tile is full and stores stay unmasked.
    tok = jnp.clip(tokens.reshape(-1).astype(jnp.int32), 0, V - 1)
    tok = jnp.pad(tok, (0, n_pad - N))

    # VMEM budget: table (x2 pipeline buffers, constant index_map) +
    # double-buffered output tile + slack; capped at 48 MiB for v7x.
    out_tile_bytes = tn * E * itemsize
    vmem_limit = min(2 * table_bytes + 2 * out_tile_bytes + (16 << 20),
                     48 << 20)

    kernel = functools.partial(_token_emb_kernel, tn=tn, scale=scale)

    out = pl.pallas_call(
        kernel,
        out_shape=jax.ShapeDtypeStruct((n_pad, E), emb_table.dtype),
        grid_spec=pltpu.PrefetchScalarGridSpec(
            num_scalar_prefetch=1,                    # token ids -> SMEM
            grid=(n_tiles,),
            in_specs=[
                # Full embedding table, constant block index -> DMA'd once
                # and resident across grid steps.
                pl.BlockSpec((V, E), lambda i, tok_ids: (0, 0)),
            ],
            out_specs=pl.BlockSpec((tn, E), lambda i, tok_ids: (i, 0)),
        ),
        compiler_params=pltpu.CompilerParams(
            dimension_semantics=("parallel",),        # shard tiles over TCs
            vmem_limit_bytes=vmem_limit,
        ),
    )(tok, emb_table)

    return out[:N].reshape(B, S, E)


if __name__ == "__main__":
    key = jax.random.PRNGKey(0)
    k_emb, k_tok = jax.random.split(key)

    vocab_size = 32
    emb_size = 128
    B, S = 2, 8

    # nn.Embedding default init: weight ~ N(0, 1)
    emb_table = jax.random.normal(k_emb, (vocab_size, emb_size), dtype=jnp.float32)
    tokens = jax.random.randint(k_tok, (B, S), 0, vocab_size, dtype=jnp.int32)

    out = token_embedding(tokens, emb_table)
    out = jax.block_until_ready(out)

    # Reference check (plain JAX gather)
    ref = jnp.take(emb_table, tokens, axis=0) * math.sqrt(emb_size)
    assert out.shape == (B, S, emb_size)
    assert jnp.allclose(out, ref, atol=1e-5, rtol=1e-5)

    print("KERNEL_OK")
</pallas_src>

<mosaic_0001>
module attributes {stable_mosaic.version = 11 : i64} {
  func.func @_token_emb_kernel(%arg0: i32, %arg1: memref<16xi32, #tpu.memory_space<smem>>, %arg2: memref<32x128xf32, #tpu.memory_space<vmem>>, %arg3: memref<16x128xf32, #tpu.memory_space<vmem>>) attributes {dimension_semantics = [#tpu.dimension_semantics<parallel>], iteration_bounds = array<i64: 1>, scalar_prefetch = 1 : i64, scratch_operands = 0 : i64, tpu.core_type = #tpu.core_type<tc>, window_params = [{pipeline_mode = #tpu.pipeline_mode<synchronous>, transform_indices = @transform_0, window_bounds = array<i64: 32, 128>}, {transform_indices = @transform_1, window_bounds = array<i64: 16, 128>}]} {
    %c16_i32 = arith.constant 16 : i32
    %0 = arith.muli %arg0, %c16_i32 : i32
    %1 = tpu.assume_multiple %0, 16 : i32
    %c0_i32 = arith.constant 0 : i32
    %c8_i32 = arith.constant 8 : i32
    %2 = arith.muli %c0_i32, %c8_i32 : i32
    %3 = tpu.assume_multiple %2, 8 : i32
    %4 = arith.addi %1, %3 : i32
    %c0_i32_0 = arith.constant 0 : i32
    %5 = arith.addi %4, %c0_i32_0 : i32
    %6 = arith.index_cast %5 : i32 to index
    %7 = memref.load %arg1[%6] : memref<16xi32, #tpu.memory_space<smem>>
    %8 = arith.index_cast %7 : i32 to index
    %c0 = arith.constant 0 : index
    %9 = vector.load %arg2[%8, %c0] : memref<32x128xf32, #tpu.memory_space<vmem>>, vector<1x128xf32>
    %10 = arith.addi %1, %3 : i32
    %c1_i32 = arith.constant 1 : i32
    %11 = arith.addi %10, %c1_i32 : i32
    %12 = arith.index_cast %11 : i32 to index
    %13 = memref.load %arg1[%12] : memref<16xi32, #tpu.memory_space<smem>>
    %14 = arith.index_cast %13 : i32 to index
    %c0_1 = arith.constant 0 : index
    %15 = vector.load %arg2[%14, %c0_1] : memref<32x128xf32, #tpu.memory_space<vmem>>, vector<1x128xf32>
    %16 = arith.addi %1, %3 : i32
    %c2_i32 = arith.constant 2 : i32
    %17 = arith.addi %16, %c2_i32 : i32
    %18 = arith.index_cast %17 : i32 to index
    %19 = memref.load %arg1[%18] : memref<16xi32, #tpu.memory_space<smem>>
    %20 = arith.index_cast %19 : i32 to index
    %c0_2 = arith.constant 0 : index
    %21 = vector.load %arg2[%20, %c0_2] : memref<32x128xf32, #tpu.memory_space<vmem>>, vector<1x128xf32>
    %22 = arith.addi %1, %3 : i32
    %c3_i32 = arith.constant 3 : i32
    %23 = arith.addi %22, %c3_i32 : i32
    %24 = arith.index_cast %23 : i32 to index
    %25 = memref.load %arg1[%24] : memref<16xi32, #tpu.memory_space<smem>>
    %26 = arith.index_cast %25 : i32 to index
    %c0_3 = arith.constant 0 : index
    %27 = vector.load %arg2[%26, %c0_3] : memref<32x128xf32, #tpu.memory_space<vmem>>, vector<1x128xf32>
    %28 = arith.addi %1, %3 : i32
    %c4_i32 = arith.constant 4 : i32
    %29 = arith.addi %28, %c4_i32 : i32
    %30 = arith.index_cast %29 : i32 to index
    %31 = memref.load %arg1[%30] : memref<16xi32, #tpu.memory_space<smem>>
    %32 = arith.index_cast %31 : i32 to index
    %c0_4 = arith.constant 0 : index
    %33 = vector.load %arg2[%32, %c0_4] : memref<32x128xf32, #tpu.memory_space<vmem>>, vector<1x128xf32>
    %34 = arith.addi %1, %3 : i32
    %c5_i32 = arith.constant 5 : i32
    %35 = arith.addi %34, %c5_i32 : i32
    %36 = arith.index_cast %35 : i32 to index
    %37 = memref.load %arg1[%36] : memref<16xi32, #tpu.memory_space<smem>>
    %38 = arith.index_cast %37 : i32 to index
    %c0_5 = arith.constant 0 : index
    %39 = vector.load %arg2[%38, %c0_5] : memref<32x128xf32, #tpu.memory_space<vmem>>, vector<1x128xf32>
    %40 = arith.addi %1, %3 : i32
    %c6_i32 = arith.constant 6 : i32
    %41 = arith.addi %40, %c6_i32 : i32
    %42 = arith.index_cast %41 : i32 to index
    %43 = memref.load %arg1[%42] : memref<16xi32, #tpu.memory_space<smem>>
    %44 = arith.index_cast %43 : i32 to index
    %c0_6 = arith.constant 0 : index
    %45 = vector.load %arg2[%44, %c0_6] : memref<32x128xf32, #tpu.memory_space<vmem>>, vector<1x128xf32>
    %46 = arith.addi %1, %3 : i32
    %c7_i32 = arith.constant 7 : i32
    %47 = arith.addi %46, %c7_i32 : i32
    %48 = arith.index_cast %47 : i32 to index
    %49 = memref.load %arg1[%48] : memref<16xi32, #tpu.memory_space<smem>>
    %50 = arith.index_cast %49 : i32 to index
    %c0_7 = arith.constant 0 : index
    %51 = vector.load %arg2[%50, %c0_7] : memref<32x128xf32, #tpu.memory_space<vmem>>, vector<1x128xf32>
    %52 = tpu.concatenate %9, %15, %21, %27, %33, %39, %45, %51 in 0 : vector<1x128xf32>, vector<1x128xf32>, vector<1x128xf32>, vector<1x128xf32>, vector<1x128xf32>, vector<1x128xf32>, vector<1x128xf32>, vector<1x128xf32> -> vector<8x128xf32>
    %cst = arith.constant 11.3137083 : f32
    %53 = vector.broadcast %cst : f32 to vector<8x128xf32>
    %54 = arith.mulf %52, %53 : vector<8x128xf32>
    %55 = arith.index_cast %3 : i32 to index
    %c0_8 = arith.constant 0 : index
    %56 = vector.load %arg3[%55, %c0_8] : memref<16x128xf32, #tpu.memory_space<vmem>>, vector<8x128xf32>
    tpu.vector_store %arg3[%55, %c0_8], %54 {strides = array<i32>} : memref<16x128xf32, #tpu.memory_space<vmem>>, vector<8x128xf32>,
    %c1_i32_9 = arith.constant 1 : i32
    %c8_i32_10 = arith.constant 8 : i32
    %57 = arith.muli %c1_i32_9, %c8_i32_10 : i32
    %58 = tpu.assume_multiple %57, 8 : i32
    %59 = arith.addi %1, %58 : i32
    %c0_i32_11 = arith.constant 0 : i32
    %60 = arith.addi %59, %c0_i32_11 : i32
    %61 = arith.index_cast %60 : i32 to index
    %62 = memref.load %arg1[%61] : memref<16xi32, #tpu.memory_space<smem>>
    %63 = arith.index_cast %62 : i32 to index
    %c0_12 = arith.constant 0 : index
    %64 = vector.load %arg2[%63, %c0_12] : memref<32x128xf32, #tpu.memory_space<vmem>>, vector<1x128xf32>
    %65 = arith.addi %1, %58 : i32
    %c1_i32_13 = arith.constant 1 : i32
    %66 = arith.addi %65, %c1_i32_13 : i32
    %67 = arith.index_cast %66 : i32 to index
    %68 = memref.load %arg1[%67] : memref<16xi32, #tpu.memory_space<smem>>
    %69 = arith.index_cast %68 : i32 to index
    %c0_14 = arith.constant 0 : index
    %70 = vector.load %arg2[%69, %c0_14] : memref<32x128xf32, #tpu.memory_space<vmem>>, vector<1x128xf32>
    %71 = arith.addi %1, %58 : i32
    %c2_i32_15 = arith.constant 2 : i32
    %72 = arith.addi %71, %c2_i32_15 : i32
    %73 = arith.index_cast %72 : i32 to index
    %74 = memref.load %arg1[%73] : memref<16xi32, #tpu.memory_space<smem>>
    %75 = arith.index_cast %74 : i32 to index
    %c0_16 = arith.constant 0 : index
    %76 = vector.load %arg2[%75, %c0_16] : memref<32x128xf32, #tpu.memory_space<vmem>>, vector<1x128xf32>
    %77 = arith.addi %1, %58 : i32
    %c3_i32_17 = arith.constant 3 : i32
    %78 = arith.addi %77, %c3_i32_17 : i32
    %79 = arith.index_cast %78 : i32 to index
    %80 = memref.load %arg1[%79] : memref<16xi32, #tpu.memory_space<smem>>
    %81 = arith.index_cast %80 : i32 to index
    %c0_18 = arith.constant 0 : index
    %82 = vector.load %arg2[%81, %c0_18] : memref<32x128xf32, #tpu.memory_space<vmem>>, vector<1x128xf32>
    %83 = arith.addi %1, %58 : i32
    %c4_i32_19 = arith.constant 4 : i32
    %84 = arith.addi %83, %c4_i32_19 : i32
    %85 = arith.index_cast %84 : i32 to index
    %86 = memref.load %arg1[%85] : memref<16xi32, #tpu.memory_space<smem>>
    %87 = arith.index_cast %86 : i32 to index
    %c0_20 = arith.constant 0 : index
    %88 = vector.load %arg2[%87, %c0_20] : memref<32x128xf32, #tpu.memory_space<vmem>>, vector<1x128xf32>
    %89 = arith.addi %1, %58 : i32
    %c5_i32_21 = arith.constant 5 : i32
    %90 = arith.addi %89, %c5_i32_21 : i32
    %91 = arith.index_cast %90 : i32 to index
    %92 = memref.load %arg1[%91] : memref<16xi32, #tpu.memory_space<smem>>
    %93 = arith.index_cast %92 : i32 to index
    %c0_22 = arith.constant 0 : index
    %94 = vector.load %arg2[%93, %c0_22] : memref<32x128xf32, #tpu.memory_space<vmem>>, vector<1x128xf32>
    %95 = arith.addi %1, %58 : i32
    %c6_i32_23 = arith.constant 6 : i32
    %96 = arith.addi %95, %c6_i32_23 : i32
    %97 = arith.index_cast %96 : i32 to index
    %98 = memref.load %arg1[%97] : memref<16xi32, #tpu.memory_space<smem>>
    %99 = arith.index_cast %98 : i32 to index
    %c0_24 = arith.constant 0 : index
    %100 = vector.load %arg2[%99, %c0_24] : memref<32x128xf32, #tpu.memory_space<vmem>>, vector<1x128xf32>
    %101 = arith.addi %1, %58 : i32
    %c7_i32_25 = arith.constant 7 : i32
    %102 = arith.addi %101, %c7_i32_25 : i32
    %103 = arith.index_cast %102 : i32 to index
    %104 = memref.load %arg1[%103] : memref<16xi32, #tpu.memory_space<smem>>
    %105 = arith.index_cast %104 : i32 to index
    %c0_26 = arith.constant 0 : index
    %106 = vector.load %arg2[%105, %c0_26] : memref<32x128xf32, #tpu.memory_space<vmem>>, vector<1x128xf32>
    %107 = tpu.concatenate %64, %70, %76, %82, %88, %94, %100, %106 in 0 : vector<1x128xf32>, vector<1x128xf32>, vector<1x128xf32>, vector<1x128xf32>, vector<1x128xf32>, vector<1x128xf32>, vector<1x128xf32>, vector<1x128xf32> -> vector<8x128xf32>
    %cst_27 = arith.constant 11.3137083 : f32
    %108 = vector.broadcast %cst_27 : f32 to vector<8x128xf32>
    %109 = arith.mulf %107, %108 : vector<8x128xf32>
    %110 = arith.index_cast %58 : i32 to index
    %c0_28 = arith.constant 0 : index
    %111 = vector.load %arg3[%110, %c0_28] : memref<16x128xf32, #tpu.memory_space<vmem>>, vector<8x128xf32>
    tpu.vector_store %arg3[%110, %c0_28], %109 {strides = array<i32>} : memref<16x128xf32, #tpu.memory_space<vmem>>, vector<8x128xf32>,
    %c2_i32_29 = arith.constant 2 : i32
    return
  }
  func.func @transform_0(%arg0: i32, %arg1: memref<16xi32, #tpu.memory_space<smem>>) -> (i32, i32) {
    %c0_i32 = arith.constant 0 : i32
    %c0_i32_0 = arith.constant 0 : i32
    %c0_i32_1 = arith.constant 0 : i32
    return %c0_i32, %c0_i32_0 : i32, i32
  }
  func.func @transform_1(%arg0: i32, %arg1: memref<16xi32, #tpu.memory_space<smem>>) -> (i32, i32) {
    %c0_i32 = arith.constant 0 : i32
    %c0_i32_0 = arith.constant 0 : i32
    return %arg0, %c0_i32 : i32, i32
  }
}

</mosaic_0001>

<llo_original>
// kernel: tpu_custom_call.1
$region0: #{tpu_custom_call.1}
  #allocation0 [shape = 'u32[]', space=smem, size = 0x4, offset = 0x4, fixed_abs, tag = 'smem constant byte address 0x4 - core index']
  #allocation1 [shape = 'u32[144,128]{1,0:T(1,128)}', space=vmem, size = 0x12000, scoped, tag = 'internal scratch']
  #allocation2 [shape = 's32[1]{0}', space=sflag, size = 0x4, scoped, tag = 'scoped memory for tpu_custom_call.1']
  #allocation3 [shape = 'u8[512]{0}', space=smem, size = 0x200, scoped, tag = 'prefetched SMEM operand 0']
  %s0 = inlined_call_operand.hbm [shape: s32[16], index: 0, kind: input, shape index: {}]
  %s1 = inlined_call_operand.hbm [shape: f32[32,128], index: 1, kind: input, shape index: {}]
  %s2 = inlined_call_operand.hbm [shape: f32[16,128], index: 2, kind: output, shape index: {}]
  %s3 = sld [smem:[#allocation0]]
  $region18: #{tpu_custom_call.1} parent=0
    _
  %s5 = ssub.s32 1, %s3
  %s6 = scalar_select 0, %s5, %s3
  %8 = dma.hbm_to_smem %s0, 16, [#allocation3], [#allocation2]
  %9 = dma.done [#allocation2], 16
  %10 = sfence
  $region1: #{tpu_custom_call.1} parent=0
    #allocation4 [shape = 'u8[16384]{0}', space=vmem, size = 0x4000, scoped, tag = 'input window, operand 1, single buffered']
    #allocation5 [shape = 's32[1]{0}', space=sflag, size = 0x4, scoped, tag = 'scoped memory for tpu_custom_call.1']
    #allocation6 [shape = 's32[1]{0}', space=sflag, size = 0x4, scoped, tag = 'scoped memory for tpu_custom_call.1']
    #allocation7 [shape = 'u8[8192]{0}', space=vmem, size = 0x2000, scoped, tag = 'output window, operand 0, single buffered']
    %11 = vsyncpa [#allocation5], 0
    %12 = vsyncpa [#allocation6], 0
    // Predicated region
    $region2: #{tpu_custom_call.1} parent=1 // pred_check
      _
    $region3: #{tpu_custom_call.1} parent=1 // pred_check_branch
      %14 = sbr.rel (0) target = $region5
    $region4: #{tpu_custom_call.1} parent=1 // pred_region
      %s16 = ssub.s32 512, 512
      %17 = vsyncadd [#allocation5], %s16
      %s18 = sshll.u32 [#allocation4], 4
      %s19 = int_to_ptr.vmem [resolvable:$true] %s18
      %24 = dma.hbm_to_vmem [thread:$0]  %s1, 512, %s19, [#allocation5], 128, 128, 8
    $region5: #{tpu_custom_call.1} parent=1 // pred_fallthru
      _
    // Predicated region
    $region6: #{tpu_custom_call.1} parent=1 // pred_check
      _
    $region7: #{tpu_custom_call.1} parent=1 // pred_check_branch
      %26 = sbr.rel (0) target = $region9
    $region8: #{tpu_custom_call.1} parent=1 // pred_region
      %27 = dma.done [#allocation5], 512
    $region9: #{tpu_custom_call.1} parent=1 // pred_fallthru
      _
    %s28 = smul.u32 0, 16
    %s29 = sadd.s32 %s28, 0
    %s30 = sld [smem:[#allocation3 + %s29]]
    %s31 = scalar_lea.vmem [#allocation4], %s30
    %v32 = vld [vmem:[%s31] sm:$0x1]
    %s33 = sadd.s32 %s29, 1
    %s34 = sld [smem:[#allocation3 + %s33]]
    %s35 = scalar_lea.vmem [#allocation4], %s34
    %v36 = vld [vmem:[%s35] sm:$0x1]
    %s37 = sadd.s32 %s29, 2
    %s38 = sld [smem:[#allocation3 + %s37]]
    %s39 = scalar_lea.vmem [#allocation4], %s38
    %v40 = vld [vmem:[%s39] sm:$0x1]
    %s41 = sadd.s32 %s29, 3
    %s42 = sld [smem:[#allocation3 + %s41]]
    %s43 = scalar_lea.vmem [#allocation4], %s42
    %v44 = vld [vmem:[%s43] sm:$0x1]
    %s45 = sadd.s32 %s29, 4
    %s46 = sld [smem:[#allocation3 + %s45]]
    %s47 = scalar_lea.vmem [#allocation4], %s46
    %v48 = vld [vmem:[%s47] sm:$0x1]
    %s49 = sadd.s32 %s29, 5
    %s50 = sld [smem:[#allocation3 + %s49]]
    %s51 = scalar_lea.vmem [#allocation4], %s50
    %v52 = vld [vmem:[%s51] sm:$0x1]
    %s53 = sadd.s32 %s29, 6
    %s54 = sld [smem:[#allocation3 + %s53]]
    %s55 = scalar_lea.vmem [#allocation4], %s54
    %v56 = vld [vmem:[%s55] sm:$0x1]
    %s57 = sadd.s32 %s29, 7
    %s58 = sld [smem:[#allocation3 + %s57]]
    %s59 = scalar_lea.vmem [#allocation4], %s58
    %v60 = vld [vmem:[%s59] sm:$0x1]
    %v62 = vrot.slane %v36, 7
    %v65 = vrot.slane %v40, 6
    %v68 = vrot.slane %v44, 5
    %v71 = vrot.slane %v48, 4
    %v74 = vrot.slane %v52, 3
    %v77 = vrot.slane %v56, 2
    %v80 = vrot.slane %v60, 1
    %vm82 = vcmask 1040384
    %v83 = vsel %vm82, %v32, %v62
    %vm84 = vcmask 1041408
    %v85 = vsel %vm84, %v83, %v65
    %vm86 = vcmask 1042432
    %v87 = vsel %vm86, %v85, %v68
    %vm88 = vcmask 1043456
    %v89 = vsel %vm88, %v87, %v71
    %vm90 = vcmask 1044480
    %v91 = vsel %vm90, %v89, %v74
    %vm92 = vcmask 1045504
    %v93 = vsel %vm92, %v91, %v77
    %vm94 = vcmask 1046528
    %v95 = vsel %vm94, %v93, %v80
    %v96 = vmul.f32 %v95, 11.313708
    %97 = vst [vmem:[#allocation7] sm:$0xff] %v96
    %s98 = sadd.s32 %s28, 8
    %s99 = sld [smem:[#allocation3 + %s98]]
    %s100 = scalar_lea.vmem [#allocation4], %s99
    %v101 = vld [vmem:[%s100] sm:$0x1]
    %s102 = sadd.s32 %s98, 1
    %s103 = sld [smem:[#allocation3 + %s102]]
    %s104 = scalar_lea.vmem [#allocation4], %s103
    %v105 = vld [vmem:[%s104] sm:$0x1]
    %s106 = sadd.s32 %s98, 2
    %s107 = sld [smem:[#allocation3 + %s106]]
    %s108 = scalar_lea.vmem [#allocation4], %s107
    %v109 = vld [vmem:[%s108] sm:$0x1]
    %s110 = sadd.s32 %s98, 3
    %s111 = sld [smem:[#allocation3 + %s110]]
    %s112 = scalar_lea.vmem [#allocation4], %s111
    %v113 = vld [vmem:[%s112] sm:$0x1]
    %s114 = sadd.s32 %s98, 4
    %s115 = sld [smem:[#allocation3 + %s114]]
    %s116 = scalar_lea.vmem [#allocation4], %s115
    %v117 = vld [vmem:[%s116] sm:$0x1]
    %s118 = sadd.s32 %s98, 5
    %s119 = sld [smem:[#allocation3 + %s118]]
    %s120 = scalar_lea.vmem [#allocation4], %s119
    %v121 = vld [vmem:[%s120] sm:$0x1]
    %s122 = sadd.s32 %s98, 6
    %s123 = sld [smem:[#allocation3 + %s122]]
    %s124 = scalar_lea.vmem [#allocation4], %s123
    %v125 = vld [vmem:[%s124] sm:$0x1]
    %s126 = sadd.s32 %s98, 7
    %s127 = sld [smem:[#allocation3 + %s126]]
    %s128 = scalar_lea.vmem [#allocation4], %s127
    %v129 = vld [vmem:[%s128] sm:$0x1]
    %v131 = vrot.slane %v105, 7
    %v134 = vrot.slane %v109, 6
    %v137 = vrot.slane %v113, 5
    %v140 = vrot.slane %v117, 4
    %v143 = vrot.slane %v121, 3
    %v146 = vrot.slane %v125, 2
    %v149 = vrot.slane %v129, 1
    %v151 = vsel %vm82, %v101, %v131
    %v152 = vsel %vm84, %v151, %v134
    %v153 = vsel %vm86, %v152, %v137
    %v154 = vsel %vm88, %v153, %v140
    %v155 = vsel %vm90, %v154, %v143
    %v156 = vsel %vm92, %v155, %v146
    %v157 = vsel %vm94, %v156, %v149
    %v158 = vmul.f32 %v157, 11.313708
    %s159 = scalar_lea.vmem [#allocation7], 8
    %160 = vst [vmem:[%s159] sm:$0xff] %v158
    // Predicated region
    $region10: #{tpu_custom_call.1} parent=1 // pred_check
      _
    $region11: #{tpu_custom_call.1} parent=1 // pred_check_branch
      %162 = sbr.rel (0) target = $region13
    $region12: #{tpu_custom_call.1} parent=1 // pred_region
      %s164 = ssub.s32 256, 256
      %165 = vsyncadd [#allocation6], %s164
      %s166 = sshll.u32 [#allocation7], 4
      %s167 = int_to_ptr.vmem [resolvable:$true] %s166
      %172 = dma.vmem_to_hbm [thread:$0]  %s167, 256, %s2, [#allocation6], 128, 128, 8
    $region13: #{tpu_custom_call.1} parent=1 // pred_fallthru
      _
    // Predicated region
    $region14: #{tpu_custom_call.1} parent=1 // pred_check
      _
    $region15: #{tpu_custom_call.1} parent=1 // pred_check_branch
      %174 = sbr.rel (0) target = $region17
    $region16: #{tpu_custom_call.1} parent=1 // pred_region
      %175 = dma.done [#allocation6], 256
    $region17: #{tpu_custom_call.1} parent=1 // pred_fallthru
      _
    %176 = vsyncpa [#allocation5], 1
    %177 = vsyncpa [#allocation6], 1

</llo_original>
